<compile_context>
chip_gen: v7x
topology: tpu7x:2x2x1
jax: 0.10.0
libtpu: 0.0.40
codegen_flags: <defaults>
</compile_context>

<pallas_src>
import functools
from types import SimpleNamespace

import jax
import jax.numpy as jnp
from jax import lax
from jax.experimental import pallas as pl
from jax.experimental.pallas import tpu as pltpu

NEG_SLOPE = 0.01  # F.leaky_relu default negative_slope


def _leaky_relu(x):
    return jnp.where(x > 0, x, NEG_SLOPE * x)


def _round8(n):
    return -(-n // 8) * 8


def _pack_offsets(sizes):
    """Sublane offsets (rounded to multiples of 8) for stacking segments in one array."""
    offs, off = [], 0
    for s in sizes:
        offs.append(off)
        off = _round8(off + s)
    return offs, off


def _pool_pad_select(B, Lp, Lo, pad_next, Rout):
    """(B*(Lo+2*pad_next), Rout) 0/1 matrix: picks the even row of each stride-2 pooling
    window per sample and places it into the next layer's padded per-sample block
    (padding rows are zero rows).  Built from iota at kernel-constant positions."""
    Lp_next = Lo + 2 * pad_next
    rows = lax.broadcasted_iota(jnp.int32, (B * Lp_next, Rout), 0)
    cols = lax.broadcasted_iota(jnp.int32, (B * Lp_next, Rout), 1)
    conds = []
    for b in range(B):
        q = rows - (b * Lp_next + pad_next)           # interior index within sample b
        conds.append((q >= 0) & (q < Lo) & (cols == b * Lp + 2 * q))
    hit = functools.reduce(jnp.logical_or, conds)
    return jnp.where(hit, 1.0, 0.0).astype(jnp.float32)


# ----------------------------------------------------------------------------
# Single fused kernel: (conv -> BN -> leaky_relu -> pool) x n  ->  MLP -> log_softmax
# ----------------------------------------------------------------------------
def _make_fused_kernel(*, B, L, Cin, layer_cfg, conv_offs, mlp_offs,
                       H1, H2, O, pooling_strat):
    n_layers = len(layer_cfg)

    def kernel(x_ref, wconv_ref, wmlp_ref, bias_ref, o_ref):
        f32 = jnp.float32

        # ---- place the input with 'same' padding; both samples stacked along rows ----
        K0 = layer_cfg[0][2]
        pad0 = (K0 - 1) // 2
        parts = []
        if pad0 > 0:
            zrow = jnp.zeros((pad0, Cin), f32)
            for b in range(B):
                parts += [zrow, x_ref[b], zrow]
        else:
            parts = [x_ref[b] for b in range(B)]
        a = jnp.concatenate(parts, axis=0)            # (B*(L + 2*pad0), Cin)

        Lc = L
        flat = None
        for i, (ci, co, K) in enumerate(layer_cfg):
            pad = (K - 1) // 2
            Lp = Lc + 2 * pad                          # padded per-sample block length
            Rout = B * Lp - 2 * pad

            # conv: im2col (lane-concat of the K shifted slices) -> ONE matmul,
            # BN(eval) scale already folded into the packed weight.
            if K > 1:
                cols = jnp.concatenate([a[k:k + Rout, :] for k in range(K)], axis=1)
            else:
                cols = a
            w = wconv_ref[conv_offs[i]:conv_offs[i] + K * ci, 0:co]
            y = jnp.dot(cols, w, preferred_element_type=f32)     # (Rout, co)
            y = _leaky_relu(y + bias_ref[i:i + 1, 0:co])         # folded bias+BN shift

            # pool(k=2, s=2): pairwise max/avg on the VPU (row-shifted operand), then
            # one even-row selection matmul that also emits the next layer's padding.
            y_nxt = jnp.concatenate([y[1:, :], y[:1, :]], axis=0)
            if pooling_strat == 'max':
                pair = jnp.maximum(y, y_nxt)
            else:
                pair = 0.5 * (y + y_nxt)
            Lo = Lc // 2

            if i < n_layers - 1:
                pad_nx = (layer_cfg[i + 1][2] - 1) // 2
                sel = _pool_pad_select(B, Lp, Lo, pad_nx, Rout)
                a = jnp.dot(sel, pair, preferred_element_type=f32)
            else:
                # last layer: slice the pooled rows straight into the channel-major
                # flattened MLP input (lane order l*C + c; w1 pre-packed to match).
                rows = []
                for b in range(B):
                    rows.append(jnp.concatenate(
                        [pair[b * Lp + 2 * l: b * Lp + 2 * l + 1, :] for l in range(Lo)],
                        axis=1))
                flat = jnp.concatenate(rows, axis=0)   # (B, Lo*co)
            Lc = Lo

        # ---- MLP head: every matmul carries all B rows ----
        nb = n_layers
        w1 = wmlp_ref[mlp_offs[0]:mlp_offs[0] + flat.shape[1], 0:H1]
        h = _leaky_relu(jnp.dot(flat, w1, preferred_element_type=f32)
                        + bias_ref[nb:nb + 1, 0:H1])
        w2 = wmlp_ref[mlp_offs[1]:mlp_offs[1] + H1, 0:H2]
        h = _leaky_relu(jnp.dot(h, w2, preferred_element_type=f32)
                        + bias_ref[nb + 1:nb + 2, 0:H2])
        wo = wmlp_ref[mlp_offs[2]:mlp_offs[2] + H2, 0:O]
        logits = jnp.dot(h, wo, preferred_element_type=f32) + bias_ref[nb + 2:nb + 3, 0:O]

        # log_softmax(dim=1), single (B, O) store
        m = jnp.max(logits, axis=-1, keepdims=True)
        lse = jnp.log(jnp.sum(jnp.exp(logits - m), axis=-1, keepdims=True)) + m
        o_ref[...] = (logits - lse).astype(o_ref.dtype)

    return kernel


# ----------------------------------------------------------------------------
# One-time parameter packing (hoisted out of the jitted forward)
# ----------------------------------------------------------------------------
def pack_params(params, input_len):
    layers = params['conv_layers']
    n_layers = len(layers)

    # conv weights: per-layer (K*Cin, Cout) with BN scale folded, sublane-stacked.
    conv_sizes = [lp['w'].shape[2] * lp['w'].shape[1] for lp in layers]
    conv_offs, conv_rows = _pack_offsets(conv_sizes)
    cmax = max(lp['w'].shape[0] for lp in layers)
    wconv = jnp.zeros((conv_rows, cmax), jnp.float32)
    for lp, off in zip(layers, conv_offs):
        cout, cin, K = lp['w'].shape
        wpk = (jnp.transpose(lp['w'], (2, 1, 0)).reshape(K * cin, cout)
               * lp['scale'][None, :])
        wconv = wconv.at[off:off + K * cin, 0:cout].set(wpk)

    # MLP weights: w1 rearranged to the kernel's (l, c) flatten order, then w2.T, wo.T.
    Lout = input_len
    for _ in layers:
        Lout //= 2
    C_last = layers[-1]['w'].shape[0]
    H1 = params['w1'].shape[0]
    H2 = params['w2'].shape[0]
    O = params['wo'].shape[0]
    W1p = (params['w1'].reshape(H1, C_last, Lout).transpose(2, 1, 0)
           .reshape(Lout * C_last, H1))
    W2p = params['w2'].T
    Wop = params['wo'].T
    mlp_offs, mlp_rows = _pack_offsets([Lout * C_last, H1, H2])
    wmax = max(H1, H2, O)
    wmlp = jnp.zeros((mlp_rows, wmax), jnp.float32)
    for seg, off in zip([W1p, W2p, Wop], mlp_offs):
        wmlp = wmlp.at[off:off + seg.shape[0], 0:seg.shape[1]].set(seg)

    # shifts (conv bias + BN folded) and MLP biases: one row each.
    couts = [lp['w'].shape[0] for lp in layers]
    bw = max(couts + [H1, H2, O])
    bias = jnp.zeros((n_layers + 3, bw), jnp.float32)
    for i, lp in enumerate(layers):
        bias = bias.at[i, 0:couts[i]].set(lp['shift'])
    bias = bias.at[n_layers, 0:H1].set(params['b1'])
    bias = bias.at[n_layers + 1, 0:H2].set(params['b2'])
    bias = bias.at[n_layers + 2, 0:O].set(params['bo'])

    return {'wconv': wconv, 'wmlp': wmlp, 'bias': bias}


# ----------------------------------------------------------------------------
# Wrapper: one pallas_call for the whole forward pass (x is NCL like PyTorch Conv1d)
# ----------------------------------------------------------------------------
def conv_model_forward(packed, x, *, args, output_size):
    B, Cin, L = x.shape
    assert Cin == args.n_features
    assert args.pooling_size == 2, "kernel assumes pooling kernel=stride=2"

    depths = list(args.depth[:2]) + ([args.depth[2]] if args.depth[2] > 0 else [])
    layer_cfg = []
    ci = args.n_features
    for i, co in enumerate(depths):
        K = args.kernel_size[i]
        assert K % 2 == 1, "only odd ('same'-padded) conv kernels supported"
        layer_cfg.append((ci, co, K))
        ci = co
    conv_offs, _ = _pack_offsets([cfg[2] * cfg[0] for cfg in layer_cfg])

    Lout = L
    for _ in layer_cfg:
        Lout //= 2
    C_last = depths[-1]
    H1, H2 = args.hidden
    mlp_offs, _ = _pack_offsets([Lout * C_last, H1, H2])

    kernel = _make_fused_kernel(
        B=B, L=L, Cin=args.n_features, layer_cfg=tuple(layer_cfg),
        conv_offs=tuple(conv_offs), mlp_offs=tuple(mlp_offs),
        H1=H1, H2=H2, O=output_size, pooling_strat=args.pooling_strat)

    x_nlc = jnp.transpose(x, (0, 2, 1))   # NCL -> NLC (only per-call data transform)

    vmem = pl.BlockSpec(memory_space=pltpu.MemorySpace.VMEM)
    return pl.pallas_call(
        kernel,
        out_shape=jax.ShapeDtypeStruct((B, output_size), jnp.float32),
        in_specs=[vmem] * 4,
        out_specs=vmem,
    )(x_nlc, packed['wconv'], packed['wmlp'], packed['bias'])


# ----------------------------------------------------------------------------
# Parameter init (deterministic, mirrors the module's __init__ shapes)
# ----------------------------------------------------------------------------
def _xavier_uniform(key, shape, fan_in, fan_out):
    bound = (6.0 / (fan_in + fan_out)) ** 0.5
    return jax.random.uniform(key, shape, jnp.float32, -bound, bound)


def init_params(key, args, output_size, input_len):
    eps = 1e-5
    depths = list(args.depth[:2]) + ([args.depth[2]] if args.depth[2] > 0 else [])
    params = {'conv_layers': []}
    cin = args.n_features
    L = input_len
    keys = iter(jax.random.split(key, 32))
    for i, cout in enumerate(depths):
        K = args.kernel_size[i]
        w = _xavier_uniform(next(keys), (cout, cin, K), cin * K, cout * K)
        bias = jax.random.uniform(next(keys), (cout,), jnp.float32, -0.1, 0.1)
        gamma = jnp.ones((cout,), jnp.float32)
        beta = jnp.zeros((cout,), jnp.float32)
        run_mean = jnp.zeros((cout,), jnp.float32)
        run_var = jnp.ones((cout,), jnp.float32)
        bn_scale = gamma / jnp.sqrt(run_var + eps)
        params['conv_layers'].append({
            'w': w,                                   # (Cout, Cin, K)
            'K': K,
            'scale': bn_scale,                        # (Cout,)
            'shift': (bias - run_mean) * bn_scale + beta,   # (Cout,)
        })
        cin = cout
        L //= 2
    feat = depths[-1] * L                             # LazyLinear in_features
    H1, H2 = args.hidden
    params['w1'] = _xavier_uniform(next(keys), (H1, feat), feat, H1)
    params['b1'] = jax.random.uniform(next(keys), (H1,), jnp.float32, -0.1, 0.1)
    params['w2'] = _xavier_uniform(next(keys), (H2, H1), H1, H2)
    params['b2'] = jax.random.uniform(next(keys), (H2,), jnp.float32, -0.1, 0.1)
    params['wo'] = _xavier_uniform(next(keys), (output_size, H2), H2, output_size)
    params['bo'] = jax.random.uniform(next(keys), (output_size,), jnp.float32, -0.1, 0.1)
    return params


# ----------------------------------------------------------------------------
# Pure-jnp reference (PyTorch semantics, eval mode)
# ----------------------------------------------------------------------------
def reference_forward(params, x, args):
    for layer in params['conv_layers']:
        K = layer['K']
        pad = (K - 1) // 2
        y = lax.conv_general_dilated(x, layer['w'], window_strides=(1,),
                                     padding=[(pad, pad)],
                                     dimension_numbers=('NCH', 'OIH', 'NCH'))
        y = y * layer['scale'][None, :, None] + layer['shift'][None, :, None]
        y = _leaky_relu(y)
        B, C, Lc = y.shape
        Lo = Lc // 2
        yr = y[:, :, :2 * Lo].reshape(B, C, Lo, 2)
        x = yr.max(-1) if args.pooling_strat == 'max' else yr.mean(-1)
    xf = x.reshape(x.shape[0], -1)
    h = _leaky_relu(xf @ params['w1'].T + params['b1'])
    h = _leaky_relu(h @ params['w2'].T + params['b2'])
    logits = h @ params['wo'].T + params['bo']
    return jax.nn.log_softmax(logits, axis=1)


if __name__ == "__main__":
    args = SimpleNamespace(n_features=4, depth=[8, 16, 16], kernel_size=[3, 3, 3],
                           pooling_size=2, pooling_strat='max', hidden=[32, 16],
                           data_dropout=0.1, layer_dropout=0.1)
    output_size = 5
    B, L = 2, 16

    key = jax.random.PRNGKey(0)
    kx, kp = jax.random.split(key)
    x = jax.random.normal(kx, (B, args.n_features, L), jnp.float32)   # NCL
    params = init_params(kp, args, output_size, L)
    packed = pack_params(params, L)      # one-time packing, outside the jitted forward

    fwd = jax.jit(functools.partial(conv_model_forward, args=args,
                                    output_size=output_size))
    out = jax.block_until_ready(fwd(packed, x))

    ref = reference_forward(params, x, args)
    assert out.shape == (B, output_size)
    assert jnp.allclose(out, ref, rtol=1e-4, atol=1e-4), (out, ref)
    print("KERNEL_OK")
</pallas_src>

<mosaic_0001>
module attributes {stable_mosaic.version = 11 : i64} {
  func.func @kernel(%arg0: memref<2x16x4xf32, #tpu.memory_space<vmem>>, %arg1: memref<88x16xf32, #tpu.memory_space<vmem>>, %arg2: memref<80x32xf32, #tpu.memory_space<vmem>>, %arg3: memref<6x32xf32, #tpu.memory_space<vmem>>, %arg4: memref<2x5xf32, #tpu.memory_space<vmem>>) attributes {dimension_semantics = [], scalar_prefetch = 0 : i64, scratch_operands = 0 : i64, tpu.core_type = #tpu.core_type<tc>} {
    %cst = arith.constant 0.000000e+00 : f32
    %0 = vector.broadcast %cst : f32 to vector<1x4xf32>
    %c0 = arith.constant 0 : index
    %c0_0 = arith.constant 0 : index
    %c0_1 = arith.constant 0 : index
    %1 = vector.load %arg0[%c0, %c0_0, %c0_1] : memref<2x16x4xf32, #tpu.memory_space<vmem>>, vector<1x16x4xf32>
    %2 = vector.shape_cast %1 : vector<1x16x4xf32> to vector<16x4xf32>
    %c1 = arith.constant 1 : index
    %c0_2 = arith.constant 0 : index
    %c0_3 = arith.constant 0 : index
    %3 = vector.load %arg0[%c1, %c0_2, %c0_3] : memref<2x16x4xf32, #tpu.memory_space<vmem>>, vector<1x16x4xf32>
    %4 = vector.shape_cast %3 : vector<1x16x4xf32> to vector<16x4xf32>
    %5 = tpu.concatenate %0, %2, %0, %0, %4, %0 in 0 : vector<1x4xf32>, vector<16x4xf32>, vector<1x4xf32>, vector<1x4xf32>, vector<16x4xf32>, vector<1x4xf32> -> vector<36x4xf32>
    %6 = vector.extract_strided_slice %5 {offsets = [0, 0], sizes = [34, 4], strides = [1, 1]} : vector<36x4xf32> to vector<34x4xf32>
    %7 = vector.extract_strided_slice %5 {offsets = [1, 0], sizes = [34, 4], strides = [1, 1]} : vector<36x4xf32> to vector<34x4xf32>
    %8 = vector.extract_strided_slice %5 {offsets = [2, 0], sizes = [34, 4], strides = [1, 1]} : vector<36x4xf32> to vector<34x4xf32>
    %9 = tpu.concatenate %6, %7, %8 in 1 : vector<34x4xf32>, vector<34x4xf32>, vector<34x4xf32> -> vector<34x12xf32>
    %c0_4 = arith.constant 0 : index
    %c0_5 = arith.constant 0 : index
    %10 = vector.load %arg1[%c0_4, %c0_5] : memref<88x16xf32, #tpu.memory_space<vmem>>, vector<12x8xf32>
    %cst_6 = arith.constant dense<0.000000e+00> : vector<34x8xf32>
    %11 = tpu.matmul %9, %10, %cst_6 {dimension_numbers = #tpu.dot_dimension_numbers<[1], [0], [0], [1], [0, 0, 1, 1], [], []>} : vector<34x12xf32>, vector<12x8xf32>, vector<34x8xf32> -> vector<34x8xf32>
    %c0_7 = arith.constant 0 : index
    %c0_8 = arith.constant 0 : index
    %12 = vector.load %arg3[%c0_7, %c0_8] : memref<6x32xf32, #tpu.memory_space<vmem>>, vector<1x8xf32>
    %13 = vector.broadcast %12 : vector<1x8xf32> to vector<34x8xf32>
    %14 = arith.addf %11, %13 : vector<34x8xf32>
    %cst_9 = arith.constant 0.000000e+00 : f32
    %15 = vector.broadcast %cst_9 : f32 to vector<34x8xf32>
    %16 = arith.cmpf ogt, %14, %15 : vector<34x8xf32>
    %cst_10 = arith.constant 0.00999999977 : f32
    %17 = vector.broadcast %cst_10 : f32 to vector<34x8xf32>
    %18 = arith.mulf %17, %14 : vector<34x8xf32>
    %19 = arith.select %16, %14, %18 : vector<34x8xi1>, vector<34x8xf32>
    %20 = vector.extract_strided_slice %19 {offsets = [1, 0], sizes = [33, 8], strides = [1, 1]} : vector<34x8xf32> to vector<33x8xf32>
    %21 = vector.extract_strided_slice %19 {offsets = [0, 0], sizes = [1, 8], strides = [1, 1]} : vector<34x8xf32> to vector<1x8xf32>
    %22 = tpu.concatenate %20, %21 in 0 : vector<33x8xf32>, vector<1x8xf32> -> vector<34x8xf32>
    %23 = arith.maximumf %19, %22 : vector<34x8xf32>
    %24 = tpu.iota {dimensions = array<i32: 0>} : vector<20x34xi32>
    %25 = tpu.iota {dimensions = array<i32: 1>} : vector<20x34xi32>
    %c1_i32 = arith.constant 1 : i32
    %26 = vector.broadcast %c1_i32 : i32 to vector<20x34xi32>
    %27 = arith.subi %24, %26 : vector<20x34xi32>
    %c0_i32 = arith.constant 0 : i32
    %28 = vector.broadcast %c0_i32 : i32 to vector<20x34xi32>
    %29 = arith.cmpi sge, %27, %28 : vector<20x34xi32>
    %c8_i32 = arith.constant 8 : i32
    %30 = vector.broadcast %c8_i32 : i32 to vector<20x34xi32>
    %31 = arith.cmpi slt, %27, %30 : vector<20x34xi32>
    %32 = arith.andi %29, %31 : vector<20x34xi1>
    %c2_i32 = arith.constant 2 : i32
    %33 = vector.broadcast %c2_i32 : i32 to vector<20x34xi32>
    %34 = arith.muli %33, %27 : vector<20x34xi32>
    %c0_i32_11 = arith.constant 0 : i32
    %35 = vector.broadcast %c0_i32_11 : i32 to vector<20x34xi32>
    %36 = arith.addi %35, %34 : vector<20x34xi32>
    %37 = arith.cmpi eq, %25, %36 : vector<20x34xi32>
    %38 = arith.andi %32, %37 : vector<20x34xi1>
    %c11_i32 = arith.constant 11 : i32
    %39 = vector.broadcast %c11_i32 : i32 to vector<20x34xi32>
    %40 = arith.subi %24, %39 : vector<20x34xi32>
    %c0_i32_12 = arith.constant 0 : i32
    %41 = vector.broadcast %c0_i32_12 : i32 to vector<20x34xi32>
    %42 = arith.cmpi sge, %40, %41 : vector<20x34xi32>
    %c8_i32_13 = arith.constant 8 : i32
    %43 = vector.broadcast %c8_i32_13 : i32 to vector<20x34xi32>
    %44 = arith.cmpi slt, %40, %43 : vector<20x34xi32>
    %45 = arith.andi %42, %44 : vector<20x34xi1>
    %c2_i32_14 = arith.constant 2 : i32
    %46 = vector.broadcast %c2_i32_14 : i32 to vector<20x34xi32>
    %47 = arith.muli %46, %40 : vector<20x34xi32>
    %c18_i32 = arith.constant 18 : i32
    %48 = vector.broadcast %c18_i32 : i32 to vector<20x34xi32>
    %49 = arith.addi %48, %47 : vector<20x34xi32>
    %50 = arith.cmpi eq, %25, %49 : vector<20x34xi32>
    %51 = arith.andi %45, %50 : vector<20x34xi1>
    %52 = arith.ori %38, %51 : vector<20x34xi1>
    %cst_15 = arith.constant 1.000000e+00 : f32
    %cst_16 = arith.constant 0.000000e+00 : f32
    %53 = vector.broadcast %cst_15 : f32 to vector<20x34xf32>
    %54 = vector.broadcast %cst_16 : f32 to vector<20x34xf32>
    %55 = arith.select %52, %53, %54 : vector<20x34xi1>, vector<20x34xf32>
    %cst_17 = arith.constant dense<0.000000e+00> : vector<20x8xf32>
    %56 = tpu.matmul %55, %23, %cst_17 {dimension_numbers = #tpu.dot_dimension_numbers<[1], [0], [0], [1], [0, 0, 1, 1], [], []>} : vector<20x34xf32>, vector<34x8xf32>, vector<20x8xf32> -> vector<20x8xf32>
    %57 = vector.extract_strided_slice %56 {offsets = [0, 0], sizes = [18, 8], strides = [1, 1]} : vector<20x8xf32> to vector<18x8xf32>
    %58 = vector.extract_strided_slice %56 {offsets = [1, 0], sizes = [18, 8], strides = [1, 1]} : vector<20x8xf32> to vector<18x8xf32>
    %59 = vector.extract_strided_slice %56 {offsets = [2, 0], sizes = [18, 8], strides = [1, 1]} : vector<20x8xf32> to vector<18x8xf32>
    %60 = tpu.concatenate %57, %58, %59 in 1 : vector<18x8xf32>, vector<18x8xf32>, vector<18x8xf32> -> vector<18x24xf32>
    %c16 = arith.constant 16 : index
    %c0_18 = arith.constant 0 : index
    %61 = vector.load %arg1[%c16, %c0_18] : memref<88x16xf32, #tpu.memory_space<vmem>>, vector<24x16xf32>
    %cst_19 = arith.constant dense<0.000000e+00> : vector<18x16xf32>
    %62 = tpu.matmul %60, %61, %cst_19 {dimension_numbers = #tpu.dot_dimension_numbers<[1], [0], [0], [1], [0, 0, 1, 1], [], []>} : vector<18x24xf32>, vector<24x16xf32>, vector<18x16xf32> -> vector<18x16xf32>
    %c1_20 = arith.constant 1 : index
    %c0_21 = arith.constant 0 : index
    %63 = vector.load %arg3[%c1_20, %c0_21] : memref<6x32xf32, #tpu.memory_space<vmem>>, vector<1x16xf32>
    %64 = vector.broadcast %63 : vector<1x16xf32> to vector<18x16xf32>
    %65 = arith.addf %62, %64 : vector<18x16xf32>
    %cst_22 = arith.constant 0.000000e+00 : f32
    %66 = vector.broadcast %cst_22 : f32 to vector<18x16xf32>
    %67 = arith.cmpf ogt, %65, %66 : vector<18x16xf32>
    %cst_23 = arith.constant 0.00999999977 : f32
    %68 = vector.broadcast %cst_23 : f32 to vector<18x16xf32>
    %69 = arith.mulf %68, %65 : vector<18x16xf32>
    %70 = arith.select %67, %65, %69 : vector<18x16xi1>, vector<18x16xf32>
    %71 = vector.extract_strided_slice %70 {offsets = [1, 0], sizes = [17, 16], strides = [1, 1]} : vector<18x16xf32> to vector<17x16xf32>
    %72 = vector.extract_strided_slice %70 {offsets = [0, 0], sizes = [1, 16], strides = [1, 1]} : vector<18x16xf32> to vector<1x16xf32>
    %73 = tpu.concatenate %71, %72 in 0 : vector<17x16xf32>, vector<1x16xf32> -> vector<18x16xf32>
    %74 = arith.maximumf %70, %73 : vector<18x16xf32>
    %75 = tpu.iota {dimensions = array<i32: 0>} : vector<12x18xi32>
    %76 = tpu.iota {dimensions = array<i32: 1>} : vector<12x18xi32>
    %c1_i32_24 = arith.constant 1 : i32
    %77 = vector.broadcast %c1_i32_24 : i32 to vector<12x18xi32>
    %78 = arith.subi %75, %77 : vector<12x18xi32>
    %c0_i32_25 = arith.constant 0 : i32
    %79 = vector.broadcast %c0_i32_25 : i32 to vector<12x18xi32>
    %80 = arith.cmpi sge, %78, %79 : vector<12x18xi32>
    %c4_i32 = arith.constant 4 : i32
    %81 = vector.broadcast %c4_i32 : i32 to vector<12x18xi32>
    %82 = arith.cmpi slt, %78, %81 : vector<12x18xi32>
    %83 = arith.andi %80, %82 : vector<12x18xi1>
    %c2_i32_26 = arith.constant 2 : i32
    %84 = vector.broadcast %c2_i32_26 : i32 to vector<12x18xi32>
    %85 = arith.muli %84, %78 : vector<12x18xi32>
    %c0_i32_27 = arith.constant 0 : i32
    %86 = vector.broadcast %c0_i32_27 : i32 to vector<12x18xi32>
    %87 = arith.addi %86, %85 : vector<12x18xi32>
    %88 = arith.cmpi eq, %76, %87 : vector<12x18xi32>
    %89 = arith.andi %83, %88 : vector<12x18xi1>
    %c7_i32 = arith.constant 7 : i32
    %90 = vector.broadcast %c7_i32 : i32 to vector<12x18xi32>
    %91 = arith.subi %75, %90 : vector<12x18xi32>
    %c0_i32_28 = arith.constant 0 : i32
    %92 = vector.broadcast %c0_i32_28 : i32 to vector<12x18xi32>
    %93 = arith.cmpi sge, %91, %92 : vector<12x18xi32>
    %c4_i32_29 = arith.constant 4 : i32
    %94 = vector.broadcast %c4_i32_29 : i32 to vector<12x18xi32>
    %95 = arith.cmpi slt, %91, %94 : vector<12x18xi32>
    %96 = arith.andi %93, %95 : vector<12x18xi1>
    %c2_i32_30 = arith.constant 2 : i32
    %97 = vector.broadcast %c2_i32_30 : i32 to vector<12x18xi32>
    %98 = arith.muli %97, %91 : vector<12x18xi32>
    %c10_i32 = arith.constant 10 : i32
    %99 = vector.broadcast %c10_i32 : i32 to vector<12x18xi32>
    %100 = arith.addi %99, %98 : vector<12x18xi32>
    %101 = arith.cmpi eq, %76, %100 : vector<12x18xi32>
    %102 = arith.andi %96, %101 : vector<12x18xi1>
    %103 = arith.ori %89, %102 : vector<12x18xi1>
    %cst_31 = arith.constant 1.000000e+00 : f32
    %cst_32 = arith.constant 0.000000e+00 : f32
    %104 = vector.broadcast %cst_31 : f32 to vector<12x18xf32>
    %105 = vector.broadcast %cst_32 : f32 to vector<12x18xf32>
    %106 = arith.select %103, %104, %105 : vector<12x18xi1>, vector<12x18xf32>
    %cst_33 = arith.constant dense<0.000000e+00> : vector<12x16xf32>
    %107 = tpu.matmul %106, %74, %cst_33 {dimension_numbers = #tpu.dot_dimension_numbers<[1], [0], [0], [1], [0, 0, 1, 1], [], []>} : vector<12x18xf32>, vector<18x16xf32>, vector<12x16xf32> -> vector<12x16xf32>
    %108 = vector.extract_strided_slice %107 {offsets = [0, 0], sizes = [10, 16], strides = [1, 1]} : vector<12x16xf32> to vector<10x16xf32>
    %109 = vector.extract_strided_slice %107 {offsets = [1, 0], sizes = [10, 16], strides = [1, 1]} : vector<12x16xf32> to vector<10x16xf32>
    %110 = vector.extract_strided_slice %107 {offsets = [2, 0], sizes = [10, 16], strides = [1, 1]} : vector<12x16xf32> to vector<10x16xf32>
    %111 = tpu.concatenate %108, %109, %110 in 1 : vector<10x16xf32>, vector<10x16xf32>, vector<10x16xf32> -> vector<10x48xf32>
    %c40 = arith.constant 40 : index
    %c0_34 = arith.constant 0 : index
    %112 = vector.load %arg1[%c40, %c0_34] : memref<88x16xf32, #tpu.memory_space<vmem>>, vector<48x16xf32>
    %cst_35 = arith.constant dense<0.000000e+00> : vector<10x16xf32>
    %113 = tpu.matmul %111, %112, %cst_35 {dimension_numbers = #tpu.dot_dimension_numbers<[1], [0], [0], [1], [0, 0, 1, 1], [], []>} : vector<10x48xf32>, vector<48x16xf32>, vector<10x16xf32> -> vector<10x16xf32>
    %c2 = arith.constant 2 : index
    %c0_36 = arith.constant 0 : index
    %114 = vector.load %arg3[%c2, %c0_36] : memref<6x32xf32, #tpu.memory_space<vmem>>, vector<1x16xf32>
    %115 = vector.broadcast %114 : vector<1x16xf32> to vector<10x16xf32>
    %116 = arith.addf %113, %115 : vector<10x16xf32>
    %cst_37 = arith.constant 0.000000e+00 : f32
    %117 = vector.broadcast %cst_37 : f32 to vector<10x16xf32>
    %118 = arith.cmpf ogt, %116, %117 : vector<10x16xf32>
    %cst_38 = arith.constant 0.00999999977 : f32
    %119 = vector.broadcast %cst_38 : f32 to vector<10x16xf32>
    %120 = arith.mulf %119, %116 : vector<10x16xf32>
    %121 = arith.select %118, %116, %120 : vector<10x16xi1>, vector<10x16xf32>
    %122 = vector.extract_strided_slice %121 {offsets = [1, 0], sizes = [9, 16], strides = [1, 1]} : vector<10x16xf32> to vector<9x16xf32>
    %123 = vector.extract_strided_slice %121 {offsets = [0, 0], sizes = [1, 16], strides = [1, 1]} : vector<10x16xf32> to vector<1x16xf32>
    %124 = tpu.concatenate %122, %123 in 0 : vector<9x16xf32>, vector<1x16xf32> -> vector<10x16xf32>
    %125 = arith.maximumf %121, %124 : vector<10x16xf32>
    %126 = vector.extract_strided_slice %125 {offsets = [0, 0], sizes = [1, 16], strides = [1, 1]} : vector<10x16xf32> to vector<1x16xf32>
    %127 = vector.extract_strided_slice %125 {offsets = [2, 0], sizes = [1, 16], strides = [1, 1]} : vector<10x16xf32> to vector<1x16xf32>
    %128 = tpu.concatenate %126, %127 in 1 : vector<1x16xf32>, vector<1x16xf32> -> vector<1x32xf32>
    %129 = vector.extract_strided_slice %125 {offsets = [6, 0], sizes = [1, 16], strides = [1, 1]} : vector<10x16xf32> to vector<1x16xf32>
    %130 = vector.extract_strided_slice %125 {offsets = [8, 0], sizes = [1, 16], strides = [1, 1]} : vector<10x16xf32> to vector<1x16xf32>
    %131 = tpu.concatenate %129, %130 in 1 : vector<1x16xf32>, vector<1x16xf32> -> vector<1x32xf32>
    %132 = tpu.concatenate %128, %131 in 0 : vector<1x32xf32>, vector<1x32xf32> -> vector<2x32xf32>
    %c0_39 = arith.constant 0 : index
    %c0_40 = arith.constant 0 : index
    %133 = vector.load %arg2[%c0_39, %c0_40] : memref<80x32xf32, #tpu.memory_space<vmem>>, vector<32x32xf32>
    %cst_41 = arith.constant dense<0.000000e+00> : vector<2x32xf32>
    %134 = tpu.matmul %132, %133, %cst_41 {dimension_numbers = #tpu.dot_dimension_numbers<[1], [0], [0], [1], [0, 0, 1, 1], [], []>} : vector<2x32xf32>, vector<32x32xf32>, vector<2x32xf32> -> vector<2x32xf32>
    %c3 = arith.constant 3 : index
    %c0_42 = arith.constant 0 : index
    %135 = vector.load %arg3[%c3, %c0_42] : memref<6x32xf32, #tpu.memory_space<vmem>>, vector<1x32xf32>
    %136 = vector.broadcast %135 : vector<1x32xf32> to vector<2x32xf32>
    %137 = arith.addf %134, %136 : vector<2x32xf32>
    %cst_43 = arith.constant 0.000000e+00 : f32
    %138 = vector.broadcast %cst_43 : f32 to vector<2x32xf32>
    %139 = arith.cmpf ogt, %137, %138 : vector<2x32xf32>
    %cst_44 = arith.constant 0.00999999977 : f32
    %140 = vector.broadcast %cst_44 : f32 to vector<2x32xf32>
    %141 = arith.mulf %140, %137 : vector<2x32xf32>
    %142 = arith.select %139, %137, %141 : vector<2x32xi1>, vector<2x32xf32>
    %c32 = arith.constant 32 : index
    %c0_45 = arith.constant 0 : index
    %143 = vector.load %arg2[%c32, %c0_45] : memref<80x32xf32, #tpu.memory_space<vmem>>, vector<32x16xf32>
    %cst_46 = arith.constant dense<0.000000e+00> : vector<2x16xf32>
    %144 = tpu.matmul %142, %143, %cst_46 {dimension_numbers = #tpu.dot_dimension_numbers<[1], [0], [0], [1], [0, 0, 1, 1], [], []>} : vector<2x32xf32>, vector<32x16xf32>, vector<2x16xf32> -> vector<2x16xf32>
    %c4 = arith.constant 4 : index
    %c0_47 = arith.constant 0 : index
    %145 = vector.load %arg3[%c4, %c0_47] : memref<6x32xf32, #tpu.memory_space<vmem>>, vector<1x16xf32>
    %146 = vector.broadcast %145 : vector<1x16xf32> to vector<2x16xf32>
    %147 = arith.addf %144, %146 : vector<2x16xf32>
    %cst_48 = arith.constant 0.000000e+00 : f32
    %148 = vector.broadcast %cst_48 : f32 to vector<2x16xf32>
    %149 = arith.cmpf ogt, %147, %148 : vector<2x16xf32>
    %cst_49 = arith.constant 0.00999999977 : f32
    %150 = vector.broadcast %cst_49 : f32 to vector<2x16xf32>
    %151 = arith.mulf %150, %147 : vector<2x16xf32>
    %152 = arith.select %149, %147, %151 : vector<2x16xi1>, vector<2x16xf32>
    %c64 = arith.constant 64 : index
    %c0_50 = arith.constant 0 : index
    %153 = vector.load %arg2[%c64, %c0_50] : memref<80x32xf32, #tpu.memory_space<vmem>>, vector<16x5xf32>
    %cst_51 = arith.constant dense<0.000000e+00> : vector<2x5xf32>
    %154 = tpu.matmul %152, %153, %cst_51 {dimension_numbers = #tpu.dot_dimension_numbers<[1], [0], [0], [1], [0, 0, 1, 1], [], []>} : vector<2x16xf32>, vector<16x5xf32>, vector<2x5xf32> -> vector<2x5xf32>
    %c5 = arith.constant 5 : index
    %c0_52 = arith.constant 0 : index
    %155 = vector.load %arg3[%c5, %c0_52] : memref<6x32xf32, #tpu.memory_space<vmem>>, vector<1x5xf32>
    %156 = vector.broadcast %155 : vector<1x5xf32> to vector<2x5xf32>
    %157 = arith.addf %154, %156 : vector<2x5xf32>
    %cst_53 = arith.constant dense<0xFF800000> : vector<2xf32>
    %158 = vector.multi_reduction <maximumf>, %157, %cst_53 [1] : vector<2x5xf32> to vector<2xf32>
    %159 = vector.shape_cast %158 : vector<2xf32> to vector<2x1xf32>
    %160 = vector.broadcast %159 : vector<2x1xf32> to vector<2x5xf32>
    %161 = arith.subf %157, %160 : vector<2x5xf32>
    %162 = math.exp %161 : vector<2x5xf32>
    %cst_54 = arith.constant dense<0.000000e+00> : vector<2xf32>
    %163 = vector.multi_reduction <add>, %162, %cst_54 [1] : vector<2x5xf32> to vector<2xf32>
    %164 = vector.shape_cast %163 : vector<2xf32> to vector<2x1xf32>
    %165 = math.log %164 : vector<2x1xf32>
    %166 = arith.addf %165, %159 : vector<2x1xf32>
    %167 = vector.broadcast %166 : vector<2x1xf32> to vector<2x5xf32>
    %168 = arith.subf %157, %167 : vector<2x5xf32>
    %c0_55 = arith.constant 0 : index
    %c0_56 = arith.constant 0 : index
    %169 = vector.load %arg4[%c0_55, %c0_56] : memref<2x5xf32, #tpu.memory_space<vmem>>, vector<2x5xf32>
    tpu.vector_store %arg4[%c0_55, %c0_56], %168 {strides = array<i32>} : memref<2x5xf32, #tpu.memory_space<vmem>>, vector<2x5xf32>,
    return
  }
}

</mosaic_0001>

<llo_original>
// kernel: conv_model_forward.1
$region0: #{conv_model_forward.1}
  #allocation0 [shape = 'u32[]', space=smem, size = 0x4, offset = 0x4, fixed_abs, tag = 'smem constant byte address 0x4 - core index']
  #allocation1 [shape = 'u32[144,128]{1,0:T(1,128)}', space=vmem, size = 0x12000, scoped, tag = 'internal scratch']
  %s0 = inlined_call_operand.vmem [shape: f32[2,16,4], index: 0, kind: input, shape index: {}]
  %s1 = inlined_call_operand.vmem [shape: f32[88,16], index: 1, kind: input, shape index: {}]
  %s2 = inlined_call_operand.vmem [shape: f32[80,32], index: 2, kind: input, shape index: {}]
  %s3 = inlined_call_operand.vmem [shape: f32[6,32], index: 3, kind: input, shape index: {}]
  %s4 = inlined_call_operand.hbm [shape: f32[2,5], index: 4, kind: output, shape index: {}]
  %s5 = sld [smem:[#allocation0]]
  $region26: #{conv_model_forward.1} parent=0
    _
  %s7 = ssub.s32 1, %s5
  %s8 = scalar_select 0, %s7, %s5
  $region1: #{conv_model_forward.1} parent=0
    #allocation2 [shape = 'u8[1024]{0}', space=vmem, size = 0x400, scoped, tag = 'output window, operand 0, single buffered']
    #allocation3 [shape = 's32[1]{0}', space=sflag, size = 0x4, scoped, tag = 'scoped memory for conv_model_forward.1']
    %9 = vsyncpa [#allocation3], 0
    // Predicated region
    $region2: #{conv_model_forward.1} parent=1 // pred_check
      _
    $region3: #{conv_model_forward.1} parent=1 // pred_check_branch
      %11 = sbr.rel (0) target = $region5
    $region4: #{conv_model_forward.1} parent=1 // pred_region
      _
    $region5: #{conv_model_forward.1} parent=1 // pred_fallthru
      _
    // Predicated region
    $region6: #{conv_model_forward.1} parent=1 // pred_check
      _
    $region7: #{conv_model_forward.1} parent=1 // pred_check_branch
      %13 = sbr.rel (0) target = $region9
    $region8: #{conv_model_forward.1} parent=1 // pred_region
      _
    $region9: #{conv_model_forward.1} parent=1 // pred_fallthru
      _
    // Predicated region
    $region10: #{conv_model_forward.1} parent=1 // pred_check
      _
    $region11: #{conv_model_forward.1} parent=1 // pred_check_branch
      %15 = sbr.rel (0) target = $region13
    $region12: #{conv_model_forward.1} parent=1 // pred_region
      _
    $region13: #{conv_model_forward.1} parent=1 // pred_fallthru
      _
    // Predicated region
    $region14: #{conv_model_forward.1} parent=1 // pred_check
      _
    $region15: #{conv_model_forward.1} parent=1 // pred_check_branch
      %17 = sbr.rel (0) target = $region17
    $region16: #{conv_model_forward.1} parent=1 // pred_region
      _
    $region17: #{conv_model_forward.1} parent=1 // pred_fallthru
      _
    %v18 = vld [vmem:[%s0] sm:$0xff]
    %v19 = vld [vmem:[%s0 + $0x8] sm:$0xff]
    %s20 = scalar_lea.vmem %s0, 16
    %v21 = vld [vmem:[%s20] sm:$0xff]
    %v22 = vld [vmem:[%s20 + $0x8] sm:$0xff]
    %vm25 = vcmask 1040384
    %v26 = vrot.slane %v18, 7
    %v27 = vrot.slane %v19, 7
    %v28 = vsel %vm25, %v26, %v27
    %vm34 = vcmask 1042432
    %v35 = vrot.slane %v21, 5
    %v36 = vrot.slane %v22, 5
    %v37 = vsel %vm34, %v35, %v36
    %v41 = vsel %vm25, 0.0, %v26
    %v42 = vsel %vm25, %v27, 0.0
    %vm43 = vcmask 1041408
    %v44 = vsel %vm43, %v42, 0.0
    %v45 = vsel %vm34, %v44, %v35
    %v46 = vsel %vm34, %v36, 0.0
    %vm50 = vcmask 1046528
    %v51 = vrot.slane %v41, 1
    %v52 = vrot.slane %v28, 1
    %v53 = vsel %vm50, %v51, %v52
    %v54 = vrot.slane %v45, 1
    %v55 = vsel %vm50, %v52, %v54
    %v56 = vrot.slane %v37, 1
    %v57 = vsel %vm50, %v54, %v56
    %v58 = vrot.slane %v46, 1
    %v59 = vsel %vm50, %v56, %v58
    %60 = vrot.lane.b32.xlu0 %v53, 4
    %v61 = vpop.permute.xlu0 %60
    %62 = vrot.lane.b32.xlu0 %v55, 4
    %v63 = vpop.permute.xlu0 %62
    %64 = vrot.lane.b32.xlu0 %v57, 4
    %v65 = vpop.permute.xlu0 %64
    %66 = vrot.lane.b32.xlu0 %v59, 4
    %v67 = vpop.permute.xlu0 %66
    %68 = vrot.lane.b32.xlu0 %v58, 4
    %v69 = vpop.permute.xlu0 %68
    %vm75 = vcmask 1045504
    %v76 = vrot.slane %v41, 2
    %v77 = vrot.slane %v28, 2
    %v78 = vsel %vm75, %v76, %v77
    %v79 = vrot.slane %v45, 2
    %v80 = vsel %vm75, %v77, %v79
    %v81 = vrot.slane %v37, 2
    %v82 = vsel %vm75, %v79, %v81
    %v83 = vrot.slane %v46, 2
    %v84 = vsel %vm75, %v81, %v83
    %85 = vrot.lane.b32.xlu0 %v78, 8
    %v86 = vpop.permute.xlu0 %85
    %87 = vrot.lane.b32.xlu0 %v80, 8
    %v88 = vpop.permute.xlu0 %87
    %89 = vrot.lane.b32.xlu0 %v82, 8
    %v90 = vpop.permute.xlu0 %89
    %91 = vrot.lane.b32.xlu0 %v84, 8
    %v92 = vpop.permute.xlu0 %91
    %93 = vrot.lane.b32.xlu0 %v83, 8
    %v94 = vpop.permute.xlu0 %93
    %vm100 = vcmask 31744
    %v101 = vsel %vm100, %v41, %v61
    %v102 = vsel %vm100, %v28, %v63
    %v103 = vsel %vm100, %v45, %v65
    %v104 = vsel %vm100, %v37, %v67
    %v105 = vsel %vm100, %v46, %v69
    %vm106 = vcmask 64512
    %v107 = vsel %vm106, %v101, %v86
    %v108 = vsel %vm106, %v102, %v88
    %v109 = vsel %vm106, %v103, %v90
    %v110 = vsel %vm106, %v104, %v92
    %v111 = vsel %vm106, %v105, %v94
    %v112 = vld [vmem:[%s1] sm:$0xff]
    %v113 = vld [vmem:[%s1 + $0x8] sm:$0xf]
    %v114 = vld [vmem:[%s3] sm:$0x1]
    %v115 = vlaneseq
    %v116 = vshrl.u32 %v115, 7
    %v117 = vsub.s32 0, %v116
    %v118 = vrot.slane %v114, %v117
    %vm119 = vcmask 97280
    %v121 = vsel %vm119, %v107, 0
    %v124 = vsel %vm119, %v108, 0
    %v127 = vsel %vm119, %v109, 0
    %v130 = vsel %vm119, %v110, 0
    %v133 = vsel %vm119, %v111, 0
    %vm135 = vcmask 1043456
    %v137 = vsel %vm135, %v113, 0
    %139 = vmatprep.subr.mxu0 0.0
    %140 = vmatpush1.msra.mxu0 %v112
    %141 = vmatprep.subr.mxu0 0.0
    %142 = vmatpush1.msra.mxu0 %v137
    %143 = vmatprep.subr.mxu0 0.0
    %144 = vmatpush1.msra.mxu0 0.0
    %145 = vmatprep.subr.mxu0 0.0
    %146 = vmatpush1.msra.mxu0 0.0
    %147 = vmatprep.subr.mxu0 0.0
    %148 = vmatpush1.msra.mxu0 0.0
    %149 = vmatprep.subr.mxu0 0.0
    %150 = vmatpush1.msra.mxu0 0.0
    %151 = vmatprep.subr.mxu0 0.0
    %152 = vmatpush1.msra.mxu0 0.0
    %153 = vmatprep.subr.mxu0 0.0
    %154 = vmatpush1.msra.mxu0 0.0
    %155 = vmatprep.subr.mxu0 0.0
    %156 = vmatpush1.msra.mxu0 0.0
    %157 = vmatprep.subr.mxu0 0.0
    %158 = vmatpush1.msra.mxu0 0.0
    %159 = vmatprep.subr.mxu0 0.0
    %160 = vmatpush1.msra.mxu0 0.0
    %161 = vmatprep.subr.mxu0 0.0
    %162 = vmatpush1.msra.mxu0 0.0
    %163 = vmatprep.subr.mxu0 0.0
    %164 = vmatpush1.msra.mxu0 0.0
    %165 = vmatprep.subr.mxu0 0.0
    %166 = vmatpush1.msra.mxu0 0.0
    %167 = vmatprep.subr.mxu0 0.0
    %168 = vmatpush1.msra.mxu0 0.0
    %169 = vmatprep.subr.mxu0 0.0
    %170 = vmatpush1.msra.mxu0 0.0
    %171 = vmatprep.subr.mxu0 0.0
    %172 = vmatpush1.msra.mxu0 0.0
    %173 = vmatprep.subr.mxu0 0.0
    %174 = vmatpush1.msra.mxu0 0.0
    %175 = vmatprep.subr.mxu0 0.0
    %176 = vmatpush1.msra.mxu0 0.0
    %177 = vmatprep.subr.mxu0 0.0
    %178 = vmatpush1.msra.mxu0 0.0
    %179 = vmatprep.subr.mxu0 0.0
    %180 = vmatpush1.msra.mxu0 0.0
    %181 = vmatprep.subr.mxu0 0.0
    %182 = vmatpush1.msra.mxu0 0.0
    %183 = vmatprep.subr.mxu0 0.0
    %184 = vmatpush1.msra.mxu0 0.0
    %185 = vmatprep.subr.mxu0 0.0
    %186 = vmatpush1.msra.mxu0 0.0
    %187 = vmatprep.subr.mxu0 0.0
    %188 = vmatpush1.msra.mxu0 0.0
    %189 = vmatprep.subr.mxu0 0.0
    %190 = vmatpush1.msra.mxu0 0.0
    %191 = vmatprep.subr.mxu0 0.0
    %192 = vmatpush1.msra.mxu0 0.0
    %193 = vmatprep.subr.mxu0 0.0
    %194 = vmatpush1.msra.mxu0 0.0
    %195 = vmatprep.subr.mxu0 0.0
    %196 = vmatpush1.msra.mxu0 0.0
    %197 = vmatprep.subr.mxu0 0.0
    %198 = vmatpush1.msra.mxu0 0.0
    %199 = vmatprep.subr.mxu0 0.0
    %200 = vmatpush1.msra.mxu0 0.0
    %201 = vmatprep.subr.mxu0 0.0
    %202 = vmatpush1.msra.mxu0 0.0
    %203 = vmatprep.mubr.f32.mxu0 0.0
    %204 = vmatmul.mubr.f32.gmra.mrb[0].mxu0 %v121
    %v205 = vpop.f32.mrb[0].mxu0
    %v206 = vadd.f32 %v118, %v205
    %v207 = vpop.f32.mrb[0].mxu0
    %208 = vmatprep.mubr.f32.mxu0 0.0
    %209 = vmatmul.mubr.f32.gmra.mrb[0].mxu0 %v124
    %v210 = vpop.f32.mrb[0].mxu0
    %v211 = vadd.f32 %v118, %v210
    %v212 = vpop.f32.mrb[0].mxu0
    %213 = vmatprep.mubr.f32.mxu0 0.0
    %214 = vmatmul.mubr.f32.gmra.mrb[0].mxu0 %v127
    %v215 = vpop.f32.mrb[0].mxu0
    %v216 = vadd.f32 %v118, %v215
    %v217 = vpop.f32.mrb[0].mxu0
    %218 = vmatprep.mubr.f32.mxu0 0.0
    %219 = vmatmul.mubr.f32.gmra.mrb[0].mxu0 %v130
    %v220 = vpop.f32.mrb[0].mxu0
    %v221 = vadd.f32 %v118, %v220
    %v222 = vpop.f32.mrb[0].mxu0
    %223 = vmatprep.mubr.f32.mxu0 0.0
    %224 = vmatmul.mubr.f32.gmra.mrb[0].mxu0 %v133
    %v225 = vpop.f32.mrb[0].mxu0
    %v226 = vadd.f32 %v118, %v225
    %v227 = vpop.f32.mrb[0].mxu0
    %228 = vdwg.mxu0
    %vm229 = vcmp.gt.f32.partialorder %v206, 0.0
    %vm230 = vcmp.gt.f32.partialorder %v211, 0.0
    %vm231 = vcmp.gt.f32.partialorder %v216, 0.0
    %vm232 = vcmp.gt.f32.partialorder %v221, 0.0
    %vm233 = vcmp.gt.f32.partialorder %v226, 0.0
    %v234 = vmul.f32 %v206, 0.01
    %v235 = vmul.f32 %v211, 0.01
    %v236 = vmul.f32 %v216, 0.01
    %v237 = vmul.f32 %v221, 0.01
    %v238 = vmul.f32 %v226, 0.01
    %v239 = vsel %vm229, %v206, %v234
    %v240 = vsel %vm230, %v211, %v235
    %v241 = vsel %vm231, %v216, %v236
    %v242 = vsel %vm232, %v221, %v237
    %v243 = vsel %vm233, %v226, %v238
    %v249 = vrot.slane %v239, 1
    %v250 = vrot.slane %v240, 1
    %v251 = vsel %vm50, %v249, %v250
    %v252 = vrot.slane %v241, 1
    %v253 = vsel %vm50, %v250, %v252
    %v254 = vrot.slane %v242, 1
    %v255 = vsel %vm50, %v252, %v254
    %v256 = vrot.slane %v243, 1
    %v257 = vsel %vm50, %v254, %v256
    %v263 = vrot.slane %v239, 7
    %v265 = vsel %vm25, %v256, %v263
    %v266 = vmax.f32 %v239, %v251
    %v267 = vmax.f32 %v240, %v253
    %v268 = vmax.f32 %v241, %v255
    %v269 = vmax.f32 %v242, %v257
    %v270 = vmax.f32 %v243, %v265
    %v271 = vlaneseq
    %v272 = vshrl.u32 %v271, 7
    %v273 = vadd.s32 %v272, 8
    %v274 = vadd.s32 %v272, 16
    %v275 = vlaneseq
    %v276 = vand.u32 %v275, 127
    %v277 = vsub.s32 %v272, 1
    %v278 = vsub.s32 %v273, 1
    %v279 = vsub.s32 %v274, 1
    %vm280 = vcmp.ge.s32.totalorder %v277, 0
    %vm281 = vcmp.ge.s32.totalorder %v278, 0
    %vm282 = vcmp.ge.s32.totalorder %v279, 0
    %vm283 = vcmp.lt.s32.totalorder %v277, 8
    %vm284 = vcmp.lt.s32.totalorder %v278, 8
    %vm285 = vcmp.lt.s32.totalorder %v279, 8
    %vm286 = vmand %vm280, %vm283
    %vm287 = vmand %vm281, %vm284
    %vm288 = vmand %vm282, %vm285
    %v289 = vmul.u32 %v277, 2
    %v290 = vmul.u32 %v278, 2
    %v291 = vmul.u32 %v279, 2
    %vm292 = vcmp.eq.s32.totalorder %v276, %v289
    %vm293 = vcmp.eq.s32.totalorder %v276, %v290
    %vm294 = vcmp.eq.s32.totalorder %v276, %v291
    %vm295 = vmand %vm286, %vm292
    %vm296 = vmand %vm287, %vm293
    %vm297 = vmand %vm288, %vm294
    %v298 = vsub.s32 %v272, 11
    %v299 = vsub.s32 %v273, 11
    %v300 = vsub.s32 %v274, 11
    %vm301 = vcmp.ge.s32.totalorder %v298, 0
    %vm302 = vcmp.ge.s32.totalorder %v299, 0
    %vm303 = vcmp.ge.s32.totalorder %v300, 0
    %vm304 = vcmp.lt.s32.totalorder %v298, 8
    %vm305 = vcmp.lt.s32.totalorder %v299, 8
    %vm306 = vcmp.lt.s32.totalorder %v300, 8
    %vm307 = vmand %vm301, %vm304
    %vm308 = vmand %vm302, %vm305
    %vm309 = vmand %vm303, %vm306
    %v310 = vmul.u32 %v298, 2
    %v311 = vmul.u32 %v299, 2
    %v312 = vmul.u32 %v300, 2
    %v313 = vadd.s32 %v310, 18
    %v314 = vadd.s32 %v311, 18
    %v315 = vadd.s32 %v312, 18
    %vm316 = vcmp.eq.s32.totalorder %v276, %v313
    %vm317 = vcmp.eq.s32.totalorder %v276, %v314
    %vm318 = vcmp.eq.s32.totalorder %v276, %v315
    %vm319 = vmand %vm307, %vm316
    %vm320 = vmand %vm308, %vm317
    %vm321 = vmand %vm309, %vm318
    %vm322 = vmor %vm295, %vm319
    %vm323 = vmor %vm296, %vm320
    %vm324 = vmor %vm297, %vm321
    %v325 = vsel %vm322, 1.0, 0.0
    %v326 = vsel %vm323, 1.0, 0.0
    %v327 = vsel %vm324, 1.0, 0.0
    %vm328 = vcmask 277504
    %v330 = vsel %vm328, %v325, 0
    %v333 = vsel %vm328, %v326, 0
    %v336 = vsel %vm328, %v327, 0
    %v339 = vsel %vm43, %v270, 0
    %341 = vmatprep.subr.mxu0 0.0
    %342 = vmatpush1.msra.mxu0 %v266
    %343 = vmatprep.subr.mxu0 0.0
    %344 = vmatpush1.msra.mxu0 %v267
    %345 = vmatprep.subr.mxu0 0.0
    %346 = vmatpush1.msra.mxu0 %v268
    %347 = vmatprep.subr.mxu0 0.0
    %348 = vmatpush1.msra.mxu0 %v269
    %349 = vmatprep.subr.mxu0 0.0
    %350 = vmatpush1.msra.mxu0 %v339
    %351 = vmatprep.subr.mxu0 0.0
    %352 = vmatpush1.msra.mxu0 0.0
    %353 = vmatprep.subr.mxu0 0.0
    %354 = vmatpush1.msra.mxu0 0.0
    %355 = vmatprep.subr.mxu0 0.0
    %356 = vmatpush1.msra.mxu0 0.0
    %357 = vmatprep.subr.mxu0 0.0
    %358 = vmatpush1.msra.mxu0 0.0
    %359 = vmatprep.subr.mxu0 0.0
    %360 = vmatpush1.msra.mxu0 0.0
    %361 = vmatprep.subr.mxu0 0.0
    %362 = vmatpush1.msra.mxu0 0.0
    %363 = vmatprep.subr.mxu0 0.0
    %364 = vmatpush1.msra.mxu0 0.0
    %365 = vmatprep.subr.mxu0 0.0
    %366 = vmatpush1.msra.mxu0 0.0
    %367 = vmatprep.subr.mxu0 0.0
    %368 = vmatpush1.msra.mxu0 0.0
    %369 = vmatprep.subr.mxu0 0.0
    %370 = vmatpush1.msra.mxu0 0.0
    %371 = vmatprep.subr.mxu0 0.0
    %372 = vmatpush1.msra.mxu0 0.0
    %373 = vmatprep.subr.mxu0 0.0
    %374 = vmatpush1.msra.mxu0 0.0
    %375 = vmatprep.subr.mxu0 0.0
    %376 = vmatpush1.msra.mxu0 0.0
    %377 = vmatprep.subr.mxu0 0.0
    %378 = vmatpush1.msra.mxu0 0.0
    %379 = vmatprep.subr.mxu0 0.0
    %380 = vmatpush1.msra.mxu0 0.0
    %381 = vmatprep.subr.mxu0 0.0
    %382 = vmatpush1.msra.mxu0 0.0
    %383 = vmatprep.subr.mxu0 0.0
    %384 = vmatpush1.msra.mxu0 0.0
    %385 = vmatprep.subr.mxu0 0.0
    %386 = vmatpush1.msra.mxu0 0.0
    %387 = vmatprep.subr.mxu0 0.0
    %388 = vmatpush1.msra.mxu0 0.0
    %389 = vmatprep.subr.mxu0 0.0
    %390 = vmatpush1.msra.mxu0 0.0
    %391 = vmatprep.subr.mxu0 0.0
    %392 = vmatpush1.msra.mxu0 0.0
    %393 = vmatprep.subr.mxu0 0.0
    %394 = vmatpush1.msra.mxu0 0.0
    %395 = vmatprep.subr.mxu0 0.0
    %396 = vmatpush1.msra.mxu0 0.0
    %397 = vmatprep.subr.mxu0 0.0
    %398 = vmatpush1.msra.mxu0 0.0
    %399 = vmatprep.subr.mxu0 0.0
    %400 = vmatpush1.msra.mxu0 0.0
    %401 = vmatprep.subr.mxu0 0.0
    %402 = vmatpush1.msra.mxu0 0.0
    %403 = vmatprep.subr.mxu0 0.0
    %404 = vmatpush1.msra.mxu0 0.0
    %405 = vmatprep.mubr.f32.mxu0 0.0
    %406 = vmatmul.mubr.f32.gmra.mrb[0].mxu0 %v330
    %v407 = vpop.f32.mrb[0].mxu0
    %v408 = vadd.f32 0.0, %v407
    %v409 = vpop.f32.mrb[0].mxu0
    %410 = vmatprep.mubr.f32.mxu0 0.0
    %411 = vmatmul.mubr.f32.gmra.mrb[0].mxu0 %v333
    %v412 = vpop.f32.mrb[0].mxu0
    %v413 = vadd.f32 0.0, %v412
    %v414 = vpop.f32.mrb[0].mxu0
    %415 = vmatprep.mubr.f32.mxu0 0.0
    %416 = vmatmul.mubr.f32.gmra.mrb[0].mxu0 %v336
    %v417 = vpop.f32.mrb[0].mxu0
    %v418 = vadd.f32 0.0, %v417
    %v419 = vpop.f32.mrb[0].mxu0
    %420 = vdwg.mxu0
    %v424 = vrot.slane %v408, 1
    %v425 = vrot.slane %v413, 1
    %v426 = vsel %vm50, %v424, %v425
    %v427 = vrot.slane %v418, 1
    %v428 = vsel %vm50, %v425, %v427
    %429 = vrot.lane.b32.xlu0 %v426, 8
    %v430 = vpop.permute.xlu0 %429
    %431 = vrot.lane.b32.xlu0 %v428, 8
    %v432 = vpop.permute.xlu0 %431
    %433 = vrot.lane.b32.xlu0 %v427, 8
    %v434 = vpop.permute.xlu0 %433
    %v438 = vrot.slane %v408, 2
    %v439 = vrot.slane %v413, 2
    %v440 = vsel %vm75, %v438, %v439
    %v441 = vrot.slane %v418, 2
    %v442 = vsel %vm75, %v439, %v441
    %443 = vrot.lane.b32.xlu0 %v440, 16
    %v444 = vpop.permute.xlu0 %443
    %445 = vrot.lane.b32.xlu0 %v442, 16
    %v446 = vpop.permute.xlu0 %445
    %447 = vrot.lane.b32.xlu0 %v441, 16
    %v448 = vpop.permute.xlu0 %447
    %v452 = vsel %vm106, %v408, %v430
    %v453 = vsel %vm106, %v413, %v432
    %v454 = vsel %vm106, %v418, %v434
    %vm455 = vcmask 130048
    %v456 = vsel %vm455, %v452, %v444
    %v457 = vsel %vm455, %v453, %v446
    %v458 = vsel %vm455, %v454, %v448
    %v459 = vld [vmem:[%s1 + $0x10] sm:$0xff]
    %v460 = vld [vmem:[%s1 + $0x18] sm:$0xff]
    %v461 = vld [vmem:[%s1 + $0x20] sm:$0xff]
    %v462 = vld [vmem:[%s3 + $0x1] sm:$0x1]
    %v463 = vlaneseq
    %v464 = vshrl.u32 %v463, 7
    %v465 = vsub.s32 0, %v464
    %v466 = vrot.slane %v462, %v465
    %vm467 = vcmask 195584
    %v469 = vsel %vm467, %v456, 0
    %v472 = vsel %vm467, %v457, 0
    %v475 = vsel %vm467, %v458, 0
    %477 = vmatprep.subr.mxu0 0.0
    %478 = vmatpush1.msra.mxu0 %v459
    %479 = vmatprep.subr.mxu0 0.0
    %480 = vmatpush1.msra.mxu0 %v460
    %481 = vmatprep.subr.mxu0 0.0
    %482 = vmatpush1.msra.mxu0 %v461
    %483 = vmatprep.subr.mxu0 0.0
    %484 = vmatpush1.msra.mxu0 0.0
    %485 = vmatprep.subr.mxu0 0.0
    %486 = vmatpush1.msra.mxu0 0.0
    %487 = vmatprep.subr.mxu0 0.0
    %488 = vmatpush1.msra.mxu0 0.0
    %489 = vmatprep.subr.mxu0 0.0
    %490 = vmatpush1.msra.mxu0 0.0
    %491 = vmatprep.subr.mxu0 0.0
    %492 = vmatpush1.msra.mxu0 0.0
    %493 = vmatprep.subr.mxu0 0.0
    %494 = vmatpush1.msra.mxu0 0.0
    %495 = vmatprep.subr.mxu0 0.0
    %496 = vmatpush1.msra.mxu0 0.0
    %497 = vmatprep.subr.mxu0 0.0
    %498 = vmatpush1.msra.mxu0 0.0
    %499 = vmatprep.subr.mxu0 0.0
    %500 = vmatpush1.msra.mxu0 0.0
    %501 = vmatprep.subr.mxu0 0.0
    %502 = vmatpush1.msra.mxu0 0.0
    %503 = vmatprep.subr.mxu0 0.0
    %504 = vmatpush1.msra.mxu0 0.0
    %505 = vmatprep.subr.mxu0 0.0
    %506 = vmatpush1.msra.mxu0 0.0
    %507 = vmatprep.subr.mxu0 0.0
    %508 = vmatpush1.msra.mxu0 0.0
    %509 = vmatprep.subr.mxu0 0.0
    %510 = vmatpush1.msra.mxu0 0.0
    %511 = vmatprep.subr.mxu0 0.0
    %512 = vmatpush1.msra.mxu0 0.0
    %513 = vmatprep.subr.mxu0 0.0
    %514 = vmatpush1.msra.mxu0 0.0
    %515 = vmatprep.subr.mxu0 0.0
    %516 = vmatpush1.msra.mxu0 0.0
    %517 = vmatprep.subr.mxu0 0.0
    %518 = vmatpush1.msra.mxu0 0.0
    %519 = vmatprep.subr.mxu0 0.0
    %520 = vmatpush1.msra.mxu0 0.0
    %521 = vmatprep.subr.mxu0 0.0
    %522 = vmatpush1.msra.mxu0 0.0
    %523 = vmatprep.subr.mxu0 0.0
    %524 = vmatpush1.msra.mxu0 0.0
    %525 = vmatprep.subr.mxu0 0.0
    %526 = vmatpush1.msra.mxu0 0.0
    %527 = vmatprep.subr.mxu0 0.0
    %528 = vmatpush1.msra.mxu0 0.0
    %529 = vmatprep.subr.mxu0 0.0
    %530 = vmatpush1.msra.mxu0 0.0
    %531 = vmatprep.subr.mxu0 0.0
    %532 = vmatpush1.msra.mxu0 0.0
    %533 = vmatprep.subr.mxu0 0.0
    %534 = vmatpush1.msra.mxu0 0.0
    %535 = vmatprep.subr.mxu0 0.0
    %536 = vmatpush1.msra.mxu0 0.0
    %537 = vmatprep.subr.mxu0 0.0
    %538 = vmatpush1.msra.mxu0 0.0
    %539 = vmatprep.subr.mxu0 0.0
    %540 = vmatpush1.msra.mxu0 0.0
    %541 = vmatprep.mubr.f32.mxu0 0.0
    %542 = vmatmul.mubr.f32.gmra.mrb[0].mxu0 %v469
    %v543 = vpop.f32.mrb[0].mxu0
    %v544 = vadd.f32 %v466, %v543
    %v545 = vpop.f32.mrb[0].mxu0
    %546 = vmatprep.mubr.f32.mxu0 0.0
    %547 = vmatmul.mubr.f32.gmra.mrb[0].mxu0 %v472
    %v548 = vpop.f32.mrb[0].mxu0
    %v549 = vadd.f32 %v466, %v548
    %v550 = vpop.f32.mrb[0].mxu0
    %551 = vmatprep.mubr.f32.mxu0 0.0
    %552 = vmatmul.mubr.f32.gmra.mrb[0].mxu0 %v475
    %v553 = vpop.f32.mrb[0].mxu0
    %v554 = vadd.f32 %v466, %v553
    %v555 = vpop.f32.mrb[0].mxu0
    %556 = vdwg.mxu0
    %vm557 = vcmp.gt.f32.partialorder %v544, 0.0
    %vm558 = vcmp.gt.f32.partialorder %v549, 0.0
    %vm559 = vcmp.gt.f32.partialorder %v554, 0.0
    %v560 = vmul.f32 %v544, 0.01
    %v561 = vmul.f32 %v549, 0.01
    %v562 = vmul.f32 %v554, 0.01
    %v563 = vsel %vm557, %v544, %v560
    %v564 = vsel %vm558, %v549, %v561
    %v565 = vsel %vm559, %v554, %v562
    %v569 = vrot.slane %v563, 1
    %v570 = vrot.slane %v564, 1
    %v571 = vsel %vm50, %v569, %v570
    %v572 = vrot.slane %v565, 1
    %v573 = vsel %vm50, %v570, %v572
    %v577 = vrot.slane %v563, 7
    %v579 = vsel %vm25, %v572, %v577
    %v580 = vmax.f32 %v563, %v571
    %v581 = vmax.f32 %v564, %v573
    %v582 = vmax.f32 %v565, %v579
    %vm583 = vcmp.lt.s32.totalorder %v277, 4
    %vm584 = vcmp.lt.s32.totalorder %v278, 4
    %vm585 = vmand %vm280, %vm583
    %vm586 = vmand %vm281, %vm584
    %vm587 = vmand %vm585, %vm292
    %vm588 = vmand %vm586, %vm293
    %v589 = vsub.s32 %v272, 7
    %v590 = vsub.s32 %v273, 7
    %vm591 = vcmp.ge.s32.totalorder %v589, 0
    %vm592 = vcmp.ge.s32.totalorder %v590, 0
    %vm593 = vcmp.lt.s32.totalorder %v589, 4
    %vm594 = vcmp.lt.s32.totalorder %v590, 4
    %vm595 = vmand %vm591, %vm593
    %vm596 = vmand %vm592, %vm594
    %v597 = vmul.u32 %v589, 2
    %v598 = vmul.u32 %v590, 2
    %v599 = vadd.s32 %v597, 10
    %v600 = vadd.s32 %v598, 10
    %vm601 = vcmp.eq.s32.totalorder %v276, %v599
    %vm602 = vcmp.eq.s32.totalorder %v276, %v600
    %vm603 = vmand %vm595, %vm601
    %vm604 = vmand %vm596, %vm602
    %vm605 = vmor %vm587, %vm603
    %vm606 = vmor %vm588, %vm604
    %v607 = vsel %vm605, 1.0, 0.0
    %v608 = vsel %vm606, 1.0, 0.0
    %vm609 = vcmask 146432
    %v611 = vsel %vm609, %v607, 0
    %v614 = vsel %vm609, %v608, 0
    %v617 = vsel %vm43, %v582, 0
    %619 = vmatprep.subr.mxu0 0.0
    %620 = vmatpush1.msra.mxu0 %v580
    %621 = vmatprep.subr.mxu0 0.0
    %622 = vmatpush1.msra.mxu0 %v581
    %623 = vmatprep.subr.mxu0 0.0
    %624 = vmatpush1.msra.mxu0 %v617
    %625 = vmatprep.subr.mxu0 0.0
    %626 = vmatpush1.msra.mxu0 0.0
    %627 = vmatprep.subr.mxu0 0.0
    %628 = vmatpush1.msra.mxu0 0.0
    %629 = vmatprep.subr.mxu0 0.0
    %630 = vmatpush1.msra.mxu0 0.0
    %631 = vmatprep.subr.mxu0 0.0
    %632 = vmatpush1.msra.mxu0 0.0
    %633 = vmatprep.subr.mxu0 0.0
    %634 = vmatpush1.msra.mxu0 0.0
    %635 = vmatprep.subr.mxu0 0.0
    %636 = vmatpush1.msra.mxu0 0.0
    %637 = vmatprep.subr.mxu0 0.0
    %638 = vmatpush1.msra.mxu0 0.0
    %639 = vmatprep.subr.mxu0 0.0
    %640 = vmatpush1.msra.mxu0 0.0
    %641 = vmatprep.subr.mxu0 0.0
    %642 = vmatpush1.msra.mxu0 0.0
    %643 = vmatprep.subr.mxu0 0.0
    %644 = vmatpush1.msra.mxu0 0.0
    %645 = vmatprep.subr.mxu0 0.0
    %646 = vmatpush1.msra.mxu0 0.0
    %647 = vmatprep.subr.mxu0 0.0
    %648 = vmatpush1.msra.mxu0 0.0
    %649 = vmatprep.subr.mxu0 0.0
    %650 = vmatpush1.msra.mxu0 0.0
    %651 = vmatprep.subr.mxu0 0.0
    %652 = vmatpush1.msra.mxu0 0.0
    %653 = vmatprep.subr.mxu0 0.0
    %654 = vmatpush1.msra.mxu0 0.0
    %655 = vmatprep.subr.mxu0 0.0
    %656 = vmatpush1.msra.mxu0 0.0
    %657 = vmatprep.subr.mxu0 0.0
    %658 = vmatpush1.msra.mxu0 0.0
    %659 = vmatprep.subr.mxu0 0.0
    %660 = vmatpush1.msra.mxu0 0.0
    %661 = vmatprep.subr.mxu0 0.0
    %662 = vmatpush1.msra.mxu0 0.0
    %663 = vmatprep.subr.mxu0 0.0
    %664 = vmatpush1.msra.mxu0 0.0
    %665 = vmatprep.subr.mxu0 0.0
    %666 = vmatpush1.msra.mxu0 0.0
    %667 = vmatprep.subr.mxu0 0.0
    %668 = vmatpush1.msra.mxu0 0.0
    %669 = vmatprep.subr.mxu0 0.0
    %670 = vmatpush1.msra.mxu0 0.0
    %671 = vmatprep.subr.mxu0 0.0
    %672 = vmatpush1.msra.mxu0 0.0
    %673 = vmatprep.subr.mxu0 0.0
    %674 = vmatpush1.msra.mxu0 0.0
    %675 = vmatprep.subr.mxu0 0.0
    %676 = vmatpush1.msra.mxu0 0.0
    %677 = vmatprep.subr.mxu0 0.0
    %678 = vmatpush1.msra.mxu0 0.0
    %679 = vmatprep.subr.mxu0 0.0
    %680 = vmatpush1.msra.mxu0 0.0
    %681 = vmatprep.subr.mxu0 0.0
    %682 = vmatpush1.msra.mxu0 0.0
    %683 = vmatprep.mubr.f32.mxu0 0.0
    %684 = vmatmul.mubr.f32.gmra.mrb[0].mxu0 %v611
    %v685 = vpop.f32.mrb[0].mxu0
    %v686 = vadd.f32 0.0, %v685
    %v687 = vpop.f32.mrb[0].mxu0
    %688 = vmatprep.mubr.f32.mxu0 0.0
    %689 = vmatmul.mubr.f32.gmra.mrb[0].mxu0 %v614
    %v690 = vpop.f32.mrb[0].mxu0
    %v691 = vadd.f32 0.0, %v690
    %v692 = vpop.f32.mrb[0].mxu0
    %693 = vdwg.mxu0
    %v696 = vrot.slane %v686, 1
    %v697 = vrot.slane %v691, 1
    %v698 = vsel %vm50, %v696, %v697
    %699 = vrot.lane.b32.xlu0 %v698, 16
    %v700 = vpop.permute.xlu0 %699
    %701 = vrot.lane.b32.xlu0 %v697, 16
    %v702 = vpop.permute.xlu0 %701
    %v705 = vrot.slane %v686, 2
    %v706 = vrot.slane %v691, 2
    %v707 = vsel %vm75, %v705, %v706
    %708 = vrot.lane.b32.xlu0 %v707, 32
    %v709 = vpop.permute.xlu0 %708
    %710 = vrot.lane.b32.xlu0 %v706, 32
    %v711 = vpop.permute.xlu0 %710
    %v714 = vsel %vm455, %v686, %v700
    %v715 = vsel %vm455, %v691, %v702
    %vm716 = vcmask 261120
    %v717 = vsel %vm716, %v714, %v709
    %v718 = vsel %vm716, %v715, %v711
    %v719 = vld [vmem:[%s1 + $0x28] sm:$0xff]
    %v720 = vld [vmem:[%s1 + $0x30] sm:$0xff]
    %v721 = vld [vmem:[%s1 + $0x38] sm:$0xff]
    %v722 = vld [vmem:[%s1 + $0x40] sm:$0xff]
    %v723 = vld [vmem:[%s1 + $0x48] sm:$0xff]
    %v724 = vld [vmem:[%s1 + $0x50] sm:$0xff]
    %v725 = vld [vmem:[%s3 + $0x2] sm:$0x1]
    %v726 = vlaneseq
    %v727 = vshrl.u32 %v726, 7
    %v728 = vsub.s32 0, %v727
    %v729 = vrot.slane %v725, %v728
    %vm730 = vcmask 392192
    %v732 = vsel %vm730, %v717, 0
    %v735 = vsel %vm730, %v718, 0
    %737 = vmatprep.subr.mxu0 0.0
    %738 = vmatpush1.msra.mxu0 %v719
    %739 = vmatprep.subr.mxu0 0.0
    %740 = vmatpush1.msra.mxu0 %v720
    %741 = vmatprep.subr.mxu0 0.0
    %742 = vmatpush1.msra.mxu0 %v721
    %743 = vmatprep.subr.mxu0 0.0
    %744 = vmatpush1.msra.mxu0 %v722
    %745 = vmatprep.subr.mxu0 0.0
    %746 = vmatpush1.msra.mxu0 %v723
    %747 = vmatprep.subr.mxu0 0.0
    %748 = vmatpush1.msra.mxu0 %v724
    %749 = vmatprep.subr.mxu0 0.0
    %750 = vmatpush1.msra.mxu0 0.0
    %751 = vmatprep.subr.mxu0 0.0
    %752 = vmatpush1.msra.mxu0 0.0
    %753 = vmatprep.subr.mxu0 0.0
    %754 = vmatpush1.msra.mxu0 0.0
    %755 = vmatprep.subr.mxu0 0.0
    %756 = vmatpush1.msra.mxu0 0.0
    %757 = vmatprep.subr.mxu0 0.0
    %758 = vmatpush1.msra.mxu0 0.0
    %759 = vmatprep.subr.mxu0 0.0
    %760 = vmatpush1.msra.mxu0 0.0
    %761 = vmatprep.subr.mxu0 0.0
    %762 = vmatpush1.msra.mxu0 0.0
    %763 = vmatprep.subr.mxu0 0.0
    %764 = vmatpush1.msra.mxu0 0.0
    %765 = vmatprep.subr.mxu0 0.0
    %766 = vmatpush1.msra.mxu0 0.0
    %767 = vmatprep.subr.mxu0 0.0
    %768 = vmatpush1.msra.mxu0 0.0
    %769 = vmatprep.subr.mxu0 0.0
    %770 = vmatpush1.msra.mxu0 0.0
    %771 = vmatprep.subr.mxu0 0.0
    %772 = vmatpush1.msra.mxu0 0.0
    %773 = vmatprep.subr.mxu0 0.0
    %774 = vmatpush1.msra.mxu0 0.0
    %775 = vmatprep.subr.mxu0 0.0
    %776 = vmatpush1.msra.mxu0 0.0
    %777 = vmatprep.subr.mxu0 0.0
    %778 = vmatpush1.msra.mxu0 0.0
    %779 = vmatprep.subr.mxu0 0.0
    %780 = vmatpush1.msra.mxu0 0.0
    %781 = vmatprep.subr.mxu0 0.0
    %782 = vmatpush1.msra.mxu0 0.0
    %783 = vmatprep.subr.mxu0 0.0
    %784 = vmatpush1.msra.mxu0 0.0
    %785 = vmatprep.subr.mxu0 0.0
    %786 = vmatpush1.msra.mxu0 0.0
    %787 = vmatprep.subr.mxu0 0.0
    %788 = vmatpush1.msra.mxu0 0.0
    %789 = vmatprep.subr.mxu0 0.0
    %790 = vmatpush1.msra.mxu0 0.0
    %791 = vmatprep.subr.mxu0 0.0
    %792 = vmatpush1.msra.mxu0 0.0
    %793 = vmatprep.subr.mxu0 0.0
    %794 = vmatpush1.msra.mxu0 0.0
    %795 = vmatprep.subr.mxu0 0.0
    %796 = vmatpush1.msra.mxu0 0.0
    %797 = vmatprep.subr.mxu0 0.0
    %798 = vmatpush1.msra.mxu0 0.0
    %799 = vmatprep.subr.mxu0 0.0
    %800 = vmatpush1.msra.mxu0 0.0
    %801 = vmatprep.mubr.f32.mxu0 0.0
    %802 = vmatmul.mubr.f32.gmra.mrb[0].mxu0 %v732
    %v803 = vpop.f32.mrb[0].mxu0
    %v804 = vadd.f32 %v729, %v803
    %v805 = vpop.f32.mrb[0].mxu0
    %806 = vmatprep.mubr.f32.mxu0 0.0
    %807 = vmatmul.mubr.f32.gmra.mrb[0].mxu0 %v735
    %v808 = vpop.f32.mrb[0].mxu0
    %v809 = vadd.f32 %v729, %v808
    %v810 = vpop.f32.mrb[0].mxu0
    %811 = vdwg.mxu0
    %vm812 = vcmp.gt.f32.partialorder %v804, 0.0
    %vm813 = vcmp.gt.f32.partialorder %v809, 0.0
    %v814 = vmul.f32 %v804, 0.01
    %v815 = vmul.f32 %v809, 0.01
    %v816 = vsel %vm812, %v804, %v814
    %v817 = vsel %vm813, %v809, %v815
    %v820 = vrot.slane %v816, 1
    %v821 = vrot.slane %v817, 1
    %v822 = vsel %vm50, %v820, %v821
    %v825 = vrot.slane %v816, 7
    %v827 = vsel %vm25, %v821, %v825
    %v828 = vmax.f32 %v816, %v822
    %v829 = vmax.f32 %v817, %v827
    %v831 = vrot.slane %v828, 2
    %832 = vrot.lane.b32.xlu0 %v831, 16
    %v833 = vpop.permute.xlu0 %832
    %v835 = vsel %vm455, %v828, %v833
    %v837 = vrot.slane %v829, 2
    %838 = vrot.lane.b32.xlu0 %v837, 16
    %v839 = vpop.permute.xlu0 %838
    %v841 = vsel %vm455, %v828, %v839
    %v843 = vrot.slane %v841, 5
    %v845 = vsel %vm25, %v835, %v843
    %v846 = vld [vmem:[%s2] sm:$0xff]
    %v847 = vld [vmem:[%s2 + $0x8] sm:$0xff]
    %v848 = vld [vmem:[%s2 + $0x10] sm:$0xff]
    %v849 = vld [vmem:[%s2 + $0x18] sm:$0xff]
    %v850 = vld [vmem:[%s3 + $0x3] sm:$0x1]
    %v851 = vlaneseq
    %v852 = vshrl.u32 %v851, 7
    %v853 = vsub.s32 0, %v852
    %v854 = vrot.slane %v850, %v853
    %v856 = vsel %vm716, %v845, 0
    %858 = vmatprep.subr.mxu0 0.0
    %859 = vmatpush1.msra.mxu0 %v846
    %860 = vmatprep.subr.mxu0 0.0
    %861 = vmatpush1.msra.mxu0 %v847
    %862 = vmatprep.subr.mxu0 0.0
    %863 = vmatpush1.msra.mxu0 %v848
    %864 = vmatprep.subr.mxu0 0.0
    %865 = vmatpush1.msra.mxu0 %v849
    %866 = vmatprep.subr.mxu0 0.0
    %867 = vmatpush1.msra.mxu0 0.0
    %868 = vmatprep.subr.mxu0 0.0
    %869 = vmatpush1.msra.mxu0 0.0
    %870 = vmatprep.subr.mxu0 0.0
    %871 = vmatpush1.msra.mxu0 0.0
    %872 = vmatprep.subr.mxu0 0.0
    %873 = vmatpush1.msra.mxu0 0.0
    %874 = vmatprep.subr.mxu0 0.0
    %875 = vmatpush1.msra.mxu0 0.0
    %876 = vmatprep.subr.mxu0 0.0
    %877 = vmatpush1.msra.mxu0 0.0
    %878 = vmatprep.subr.mxu0 0.0
    %879 = vmatpush1.msra.mxu0 0.0
    %880 = vmatprep.subr.mxu0 0.0
    %881 = vmatpush1.msra.mxu0 0.0
    %882 = vmatprep.subr.mxu0 0.0
    %883 = vmatpush1.msra.mxu0 0.0
    %884 = vmatprep.subr.mxu0 0.0
    %885 = vmatpush1.msra.mxu0 0.0
    %886 = vmatprep.subr.mxu0 0.0
    %887 = vmatpush1.msra.mxu0 0.0
    %888 = vmatprep.subr.mxu0 0.0
    %889 = vmatpush1.msra.mxu0 0.0
    %890 = vmatprep.subr.mxu0 0.0
    %891 = vmatpush1.msra.mxu0 0.0
    %892 = vmatprep.subr.mxu0 0.0
    %893 = vmatpush1.msra.mxu0 0.0
    %894 = vmatprep.subr.mxu0 0.0
    %895 = vmatpush1.msra.mxu0 0.0
    %896 = vmatprep.subr.mxu0 0.0
    %897 = vmatpush1.msra.mxu0 0.0
    %898 = vmatprep.subr.mxu0 0.0
    %899 = vmatpush1.msra.mxu0 0.0
    %900 = vmatprep.subr.mxu0 0.0
    %901 = vmatpush1.msra.mxu0 0.0
    %902 = vmatprep.subr.mxu0 0.0
    %903 = vmatpush1.msra.mxu0 0.0
    %904 = vmatprep.subr.mxu0 0.0
    %905 = vmatpush1.msra.mxu0 0.0
    %906 = vmatprep.subr.mxu0 0.0
    %907 = vmatpush1.msra.mxu0 0.0
    %908 = vmatprep.subr.mxu0 0.0
    %909 = vmatpush1.msra.mxu0 0.0
    %910 = vmatprep.subr.mxu0 0.0
    %911 = vmatpush1.msra.mxu0 0.0
    %912 = vmatprep.subr.mxu0 0.0
    %913 = vmatpush1.msra.mxu0 0.0
    %914 = vmatprep.subr.mxu0 0.0
    %915 = vmatpush1.msra.mxu0 0.0
    %916 = vmatprep.subr.mxu0 0.0
    %917 = vmatpush1.msra.mxu0 0.0
    %918 = vmatprep.subr.mxu0 0.0
    %919 = vmatpush1.msra.mxu0 0.0
    %920 = vmatprep.subr.mxu0 0.0
    %921 = vmatpush1.msra.mxu0 0.0
    %922 = vmatprep.mubr.f32.mxu0 0.0
    %923 = vmatmul.mubr.f32.gmra.mrb[0].mxu0 %v856
    %v924 = vpop.f32.mrb[0].mxu0
    %v925 = vadd.f32 %v854, %v924
    %v926 = vpop.f32.mrb[0].mxu0
    %927 = vdwg.mxu0
    %vm928 = vcmp.gt.f32.partialorder %v925, 0.0
    %v929 = vmul.f32 %v925, 0.01
    %v930 = vsel %vm928, %v925, %v929
    %v931 = vld [vmem:[%s2 + $0x20] sm:$0xff]
    %v932 = vld [vmem:[%s2 + $0x28] sm:$0xff]
    %v933 = vld [vmem:[%s2 + $0x30] sm:$0xff]
    %v934 = vld [vmem:[%s2 + $0x38] sm:$0xff]
    %v935 = vld [vmem:[%s3 + $0x4] sm:$0x1]
    %v936 = vlaneseq
    %v937 = vshrl.u32 %v936, 7
    %v938 = vsub.s32 0, %v937
    %v939 = vrot.slane %v935, %v938
    %v941 = vsel %vm716, %v930, 0
    %943 = vmatprep.subr.mxu0 0.0
    %944 = vmatpush1.msra.mxu0 %v931
    %945 = vmatprep.subr.mxu0 0.0
    %946 = vmatpush1.msra.mxu0 %v932
    %947 = vmatprep.subr.mxu0 0.0
    %948 = vmatpush1.msra.mxu0 %v933
    %949 = vmatprep.subr.mxu0 0.0
    %950 = vmatpush1.msra.mxu0 %v934
    %951 = vmatprep.subr.mxu0 0.0
    %952 = vmatpush1.msra.mxu0 0.0
    %953 = vmatprep.subr.mxu0 0.0
    %954 = vmatpush1.msra.mxu0 0.0
    %955 = vmatprep.subr.mxu0 0.0
    %956 = vmatpush1.msra.mxu0 0.0
    %957 = vmatprep.subr.mxu0 0.0
    %958 = vmatpush1.msra.mxu0 0.0
    %959 = vmatprep.subr.mxu0 0.0
    %960 = vmatpush1.msra.mxu0 0.0
    %961 = vmatprep.subr.mxu0 0.0
    %962 = vmatpush1.msra.mxu0 0.0
    %963 = vmatprep.subr.mxu0 0.0
    %964 = vmatpush1.msra.mxu0 0.0
    %965 = vmatprep.subr.mxu0 0.0
    %966 = vmatpush1.msra.mxu0 0.0
    %967 = vmatprep.subr.mxu0 0.0
    %968 = vmatpush1.msra.mxu0 0.0
    %969 = vmatprep.subr.mxu0 0.0
    %970 = vmatpush1.msra.mxu0 0.0
    %971 = vmatprep.subr.mxu0 0.0
    %972 = vmatpush1.msra.mxu0 0.0
    %973 = vmatprep.subr.mxu0 0.0
    %974 = vmatpush1.msra.mxu0 0.0
    %975 = vmatprep.subr.mxu0 0.0
    %976 = vmatpush1.msra.mxu0 0.0
    %977 = vmatprep.subr.mxu0 0.0
    %978 = vmatpush1.msra.mxu0 0.0
    %979 = vmatprep.subr.mxu0 0.0
    %980 = vmatpush1.msra.mxu0 0.0
    %981 = vmatprep.subr.mxu0 0.0
    %982 = vmatpush1.msra.mxu0 0.0
    %983 = vmatprep.subr.mxu0 0.0
    %984 = vmatpush1.msra.mxu0 0.0
    %985 = vmatprep.subr.mxu0 0.0
    %986 = vmatpush1.msra.mxu0 0.0
    %987 = vmatprep.subr.mxu0 0.0
    %988 = vmatpush1.msra.mxu0 0.0
    %989 = vmatprep.subr.mxu0 0.0
    %990 = vmatpush1.msra.mxu0 0.0
    %991 = vmatprep.subr.mxu0 0.0
    %992 = vmatpush1.msra.mxu0 0.0
    %993 = vmatprep.subr.mxu0 0.0
    %994 = vmatpush1.msra.mxu0 0.0
    %995 = vmatprep.subr.mxu0 0.0
    %996 = vmatpush1.msra.mxu0 0.0
    %997 = vmatprep.subr.mxu0 0.0
    %998 = vmatpush1.msra.mxu0 0.0
    %999 = vmatprep.subr.mxu0 0.0
    %1000 = vmatpush1.msra.mxu0 0.0
    %1001 = vmatprep.subr.mxu0 0.0
    %1002 = vmatpush1.msra.mxu0 0.0
    %1003 = vmatprep.subr.mxu0 0.0
    %1004 = vmatpush1.msra.mxu0 0.0
    %1005 = vmatprep.subr.mxu0 0.0
    %1006 = vmatpush1.msra.mxu0 0.0
    %1007 = vmatprep.mubr.f32.mxu0 0.0
    %1008 = vmatmul.mubr.f32.gmra.mrb[0].mxu0 %v941
    %v1009 = vpop.f32.mrb[0].mxu0
    %v1010 = vadd.f32 %v939, %v1009
    %v1011 = vpop.f32.mrb[0].mxu0
    %1012 = vdwg.mxu0
    %vm1013 = vcmp.gt.f32.partialorder %v1010, 0.0
    %v1014 = vmul.f32 %v1010, 0.01
    %v1015 = vsel %vm1013, %v1010, %v1014
    %v1016 = vld [vmem:[%s2 + $0x40] sm:$0xff]
    %v1017 = vld [vmem:[%s2 + $0x48] sm:$0xff]
    %v1018 = vld [vmem:[%s3 + $0x5] sm:$0x1]
    %v1019 = vlaneseq
    %v1020 = vshrl.u32 %v1019, 7
    %v1021 = vsub.s32 0, %v1020
    %v1022 = vrot.slane %v1018, %v1021
    %v1024 = vsel %vm455, %v1015, 0
    %1026 = vmatprep.subr.mxu0 0.0
    %1027 = vmatpush1.msra.mxu0 %v1016
    %1028 = vmatprep.subr.mxu0 0.0
    %1029 = vmatpush1.msra.mxu0 %v1017
    %1030 = vmatprep.subr.mxu0 0.0
    %1031 = vmatpush1.msra.mxu0 0.0
    %1032 = vmatprep.subr.mxu0 0.0
    %1033 = vmatpush1.msra.mxu0 0.0
    %1034 = vmatprep.subr.mxu0 0.0
    %1035 = vmatpush1.msra.mxu0 0.0
    %1036 = vmatprep.subr.mxu0 0.0
    %1037 = vmatpush1.msra.mxu0 0.0
    %1038 = vmatprep.subr.mxu0 0.0
    %1039 = vmatpush1.msra.mxu0 0.0
    %1040 = vmatprep.subr.mxu0 0.0
    %1041 = vmatpush1.msra.mxu0 0.0
    %1042 = vmatprep.subr.mxu0 0.0
    %1043 = vmatpush1.msra.mxu0 0.0
    %1044 = vmatprep.subr.mxu0 0.0
    %1045 = vmatpush1.msra.mxu0 0.0
    %1046 = vmatprep.subr.mxu0 0.0
    %1047 = vmatpush1.msra.mxu0 0.0
    %1048 = vmatprep.subr.mxu0 0.0
    %1049 = vmatpush1.msra.mxu0 0.0
    %1050 = vmatprep.subr.mxu0 0.0
    %1051 = vmatpush1.msra.mxu0 0.0
    %1052 = vmatprep.subr.mxu0 0.0
    %1053 = vmatpush1.msra.mxu0 0.0
    %1054 = vmatprep.subr.mxu0 0.0
    %1055 = vmatpush1.msra.mxu0 0.0
    %1056 = vmatprep.subr.mxu0 0.0
    %1057 = vmatpush1.msra.mxu0 0.0
    %1058 = vmatprep.subr.mxu0 0.0
    %1059 = vmatpush1.msra.mxu0 0.0
    %1060 = vmatprep.subr.mxu0 0.0
    %1061 = vmatpush1.msra.mxu0 0.0
    %1062 = vmatprep.subr.mxu0 0.0
    %1063 = vmatpush1.msra.mxu0 0.0
    %1064 = vmatprep.subr.mxu0 0.0
    %1065 = vmatpush1.msra.mxu0 0.0
    %1066 = vmatprep.subr.mxu0 0.0
    %1067 = vmatpush1.msra.mxu0 0.0
    %1068 = vmatprep.subr.mxu0 0.0
    %1069 = vmatpush1.msra.mxu0 0.0
    %1070 = vmatprep.subr.mxu0 0.0
    %1071 = vmatpush1.msra.mxu0 0.0
    %1072 = vmatprep.subr.mxu0 0.0
    %1073 = vmatpush1.msra.mxu0 0.0
    %1074 = vmatprep.subr.mxu0 0.0
    %1075 = vmatpush1.msra.mxu0 0.0
    %1076 = vmatprep.subr.mxu0 0.0
    %1077 = vmatpush1.msra.mxu0 0.0
    %1078 = vmatprep.subr.mxu0 0.0
    %1079 = vmatpush1.msra.mxu0 0.0
    %1080 = vmatprep.subr.mxu0 0.0
    %1081 = vmatpush1.msra.mxu0 0.0
    %1082 = vmatprep.subr.mxu0 0.0
    %1083 = vmatpush1.msra.mxu0 0.0
    %1084 = vmatprep.subr.mxu0 0.0
    %1085 = vmatpush1.msra.mxu0 0.0
    %1086 = vmatprep.subr.mxu0 0.0
    %1087 = vmatpush1.msra.mxu0 0.0
    %1088 = vmatprep.subr.mxu0 0.0
    %1089 = vmatpush1.msra.mxu0 0.0
    %1090 = vmatprep.mubr.f32.mxu0 0.0
    %1091 = vmatmul.mubr.f32.gmra.mrb[0].mxu0 %v1024
    %v1092 = vpop.f32.mrb[0].mxu0
    %v1093 = vadd.f32 %v1022, %v1092
    %v1094 = vpop.f32.mrb[0].mxu0
    %1095 = vdwg.mxu0
    %vm1096 = vcmask 33792
    %v1097 = vsel %vm1096, %v1093, -inf
    %1098 = vmax.xlane.f32.xlu0 %v1097
    %v1099 = vpop.xlane.xlu0 %1098
    %v1100 = vsub.f32 %v1093, %v1099
    %v1101 = vmul.f32 %v1100, 1.442695
    %v1102 = vpow.pop %v1101
    %v1103 = vsel %vm1096, %v1102, 0.0
    %1104 = vadd.xlane.f32.xlu0 %v1103
    %v1105 = vpop.xlane.xlu0 %1104
    %v1106 = vlog2.pop %v1105
    %v1107 = vmul.f32 %v1106, 0.6931472
    %v1108 = vadd.f32 %v1107, %v1099
    %v1109 = vsub.f32 %v1093, %v1108
    %1110 = vst.msk [vmem:[#allocation2] sm:$0x3] %vm1096, %v1109
    // Predicated region
    $region18: #{conv_model_forward.1} parent=1 // pred_check
      _
    $region19: #{conv_model_forward.1} parent=1 // pred_check_branch
      %1112 = sbr.rel (0) target = $region21
    $region20: #{conv_model_forward.1} parent=1 // pred_region
      %s1114 = ssub.s32 32, 32
      %1115 = vsyncadd [#allocation3], %s1114
      %s1117 = sshll.u32 [#allocation2], 4
      %s1118 = int_to_ptr.vmem [resolvable:$true] %s1117
      %1120 = dma.vmem_to_hbm [thread:$0]  %s1118, 32, %s4, [#allocation3]
    $region21: #{conv_model_forward.1} parent=1 // pred_fallthru
      _
    // Predicated region
    $region22: #{conv_model_forward.1} parent=1 // pred_check
      _
    $region23: #{conv_model_forward.1} parent=1 // pred_check_branch
      %1122 = sbr.rel (0) target = $region25
    $region24: #{conv_model_forward.1} parent=1 // pred_region
      %1123 = dma.done [#allocation3], 32
    $region25: #{conv_model_forward.1} parent=1 // pred_fallthru
      _
    %1124 = vsyncpa [#allocation3], 1

</llo_original>
